<compile_context>
chip_gen: v7x
topology: tpu7x:2x2x1
jax: 0.10.0
libtpu: 0.0.40
codegen_flags: <defaults>
</compile_context>

<pallas_src>
import functools

import jax
import jax.numpy as jnp
from jax.experimental import pallas as pl
from jax.experimental.pallas import tpu as pltpu


def _round_up(x, m):
    return (x + m - 1) // m * m


def rnn_fc_kernel(x_ref, w_ih_ref, w_hh_ref, b_ref, w_fc_ref, b_fc_ref,
                  out_ref):
    """Whole-sequence RNN + fused Linear, everything resident in VMEM.

    x_ref    : (Bp, seq, I)   batch-major input (compute dtype)
    w_ih_ref : (I, H)         pre-transposed (x_t @ w_ih), compute dtype
    w_hh_ref : (H, H)  f32    pre-transposed (h @ w_hh); recurrence stays f32
    b_ref    : (1, H)  f32    (= b_ih + b_hh)
    w_fc_ref : (H, O)         pre-transposed, compute dtype
    b_fc_ref : (1, O)  f32
    out_ref  : (Bp, seq, O)   f32, batch-major (no wrapper transpose needed)
    """
    bp, seq, i_dim = x_ref.shape
    h_dim = w_hh_ref.shape[0]
    o_dim = w_fc_ref.shape[1]

    # ---- (1) Hoisted input projection: one tall matmul for all timesteps ----
    # (Bp, seq, I) -> (Bp*seq, I) is layout-preserving because seq is a
    # multiple of 8 (full sublane groups).
    x_all = x_ref[...].reshape(bp * seq, i_dim)
    xw = jnp.dot(x_all, w_ih_ref[...], preferred_element_type=jnp.float32)
    xw = (xw + b_ref[...]).reshape(bp, seq, h_dim)     # bias folded in once

    w_hh = w_hh_ref[...]                               # f32, hoisted load

    # ---- (2) Serial recurrence (the only sequential part), fully unrolled,
    #          pure f32, hidden states kept in registers -----------------------
    h = jnp.zeros((bp, h_dim), jnp.float32)
    hs = []
    for t in range(seq):                               # seq is static & small
        pre = xw[:, t, :] + jnp.dot(h, w_hh,
                                    preferred_element_type=jnp.float32)
        h = jnp.tanh(pre)                              # EUP, f32
        hs.append(h)

    # ---- (3) Hoisted FC: one tall matmul + one bulk batch-major store -------
    h_all = jnp.stack(hs, axis=1)                      # (Bp, seq, H), registers
    h_flat = h_all.reshape(bp * seq, h_dim).astype(w_fc_ref.dtype)
    y = jnp.dot(h_flat, w_fc_ref[...], preferred_element_type=jnp.float32)
    y = y + b_fc_ref[...]
    out_ref[...] = y.reshape(bp, seq, o_dim).astype(out_ref.dtype)


@functools.partial(jax.jit,
                   static_argnames=("sequence_length", "input_size",
                                    "compute_dtype"))
def rnn_forward(x, params, *, sequence_length, input_size,
                compute_dtype=jnp.float32):
    """x: (B, seq*input_size) or (B, seq, input_size), batch_first.
    Returns (B, seq, num_outputs) float32."""
    B = x.shape[0]
    x = x.reshape(B, sequence_length, input_size)

    w_ih_t, w_hh_t, b_sum, w_fc_t, b_fc = params
    H = w_hh_t.shape[0]
    O = w_fc_t.shape[1]

    # Pad batch to a full sublane group (8); zero rows are cropped afterward.
    # Single fused pad(+cast) pass over x — no wrapper transpose anymore.
    Bp = _round_up(B, 8)
    x_p = jnp.pad(x, ((0, Bp - B), (0, 0), (0, 0))).astype(compute_dtype)

    w_ih_c = w_ih_t.astype(compute_dtype)          # hoisted matmul operand
    w_fc_c = w_fc_t.astype(compute_dtype)          # hoisted matmul operand
    w_hh_f32 = w_hh_t.astype(jnp.float32)          # recurrence always f32
    b_sum_f32 = b_sum.astype(jnp.float32)
    b_fc_f32 = b_fc.astype(jnp.float32)

    vmem_spec = pl.BlockSpec(memory_space=pltpu.MemorySpace.VMEM)

    out = pl.pallas_call(
        rnn_fc_kernel,
        out_shape=jax.ShapeDtypeStruct((Bp, sequence_length, O), jnp.float32),
        in_specs=[vmem_spec] * 6,
        out_specs=vmem_spec,
    )(x_p, w_ih_c, w_hh_f32, b_sum_f32, w_fc_c, b_fc_f32)

    return out[:B]                                  # crop padded batch rows


def init_params(key, *, input_size, hidden_size, num_outputs):
    """Deterministic init mimicking PyTorch's uniform(-1/sqrt(H), 1/sqrt(H))."""
    k1, k2, k3, k4, k5, k6 = jax.random.split(key, 6)
    s = 1.0 / jnp.sqrt(hidden_size)
    w_ih = jax.random.uniform(k1, (hidden_size, input_size), jnp.float32, -s, s)
    w_hh = jax.random.uniform(k2, (hidden_size, hidden_size), jnp.float32, -s, s)
    b_ih = jax.random.uniform(k3, (hidden_size,), jnp.float32, -s, s)
    b_hh = jax.random.uniform(k4, (hidden_size,), jnp.float32, -s, s)
    w_fc = jax.random.uniform(k5, (num_outputs, hidden_size), jnp.float32, -s, s)
    b_fc = jax.random.uniform(k6, (num_outputs,), jnp.float32, -s, s)
    # Pre-transpose / pre-combine for the kernel.
    return (w_ih.T,                        # (I, H)
            w_hh.T,                        # (H, H)
            (b_ih + b_hh).reshape(1, -1),  # (1, H)
            w_fc.T,                        # (H, O)
            b_fc.reshape(1, -1))           # (1, O)


def reference_forward(x, params, *, sequence_length, input_size):
    """Pure-JAX f32 reference of the same semantics (self-check)."""
    w_ih_t, w_hh_t, b_sum, w_fc_t, b_fc = params
    B = x.shape[0]
    x = x.reshape(B, sequence_length, input_size)
    H = w_hh_t.shape[0]
    h = jnp.zeros((B, H), jnp.float32)
    outs = []
    for t in range(sequence_length):
        h = jnp.tanh(x[:, t, :] @ w_ih_t + h @ w_hh_t + b_sum)
        outs.append(h @ w_fc_t + b_fc)
    return jnp.stack(outs, axis=1)


if __name__ == "__main__":
    num_outputs = 4
    input_size = 16
    sequence_length = 8
    hidden_size = 32
    batch = 2          # nn.RNN constructed with default num_layers=1

    key = jax.random.PRNGKey(0)
    kx, kp = jax.random.split(key)
    x = jax.random.normal(kx, (batch, sequence_length, input_size), jnp.float32)
    params = init_params(kp, input_size=input_size, hidden_size=hidden_size,
                         num_outputs=num_outputs)

    ref = reference_forward(x, params, sequence_length=sequence_length,
                            input_size=input_size)

    # f32 matmul path (default; best on v5e and at this shape everywhere).
    out_f32 = jax.block_until_ready(
        rnn_forward(x, params, sequence_length=sequence_length,
                    input_size=input_size, compute_dtype=jnp.float32))
    assert out_f32.shape == (batch, sequence_length, num_outputs)
    assert jnp.allclose(out_f32, ref, atol=1e-4, rtol=1e-4)

    # bf16 only for the two hoisted matmuls (v6e/v7x MXU path); the f32
    # recurrence keeps the error small — loose check vs the f32 reference.
    out_bf16 = jax.block_until_ready(
        rnn_forward(x, params, sequence_length=sequence_length,
                    input_size=input_size, compute_dtype=jnp.bfloat16))
    assert out_bf16.shape == (batch, sequence_length, num_outputs)
    assert jnp.allclose(out_bf16, ref, atol=1e-1, rtol=1e-1)

    print("KERNEL_OK")
</pallas_src>

<mosaic_0001>
module attributes {stable_mosaic.version = 11 : i64} {
  func.func @rnn_fc_kernel(%arg0: memref<8x8x16xf32, #tpu.memory_space<vmem>>, %arg1: memref<16x32xf32, #tpu.memory_space<vmem>>, %arg2: memref<32x32xf32, #tpu.memory_space<vmem>>, %arg3: memref<1x32xf32, #tpu.memory_space<vmem>>, %arg4: memref<32x4xf32, #tpu.memory_space<vmem>>, %arg5: memref<1x4xf32, #tpu.memory_space<vmem>>, %arg6: memref<8x8x4xf32, #tpu.memory_space<vmem>>) attributes {dimension_semantics = [], scalar_prefetch = 0 : i64, scratch_operands = 0 : i64, tpu.core_type = #tpu.core_type<tc>} {
    %c0 = arith.constant 0 : index
    %c0_0 = arith.constant 0 : index
    %c0_1 = arith.constant 0 : index
    %0 = vector.load %arg0[%c0, %c0_0, %c0_1] : memref<8x8x16xf32, #tpu.memory_space<vmem>>, vector<8x8x16xf32>
    %1 = vector.shape_cast %0 : vector<8x8x16xf32> to vector<64x16xf32>
    %c0_2 = arith.constant 0 : index
    %c0_3 = arith.constant 0 : index
    %2 = vector.load %arg1[%c0_2, %c0_3] : memref<16x32xf32, #tpu.memory_space<vmem>>, vector<16x32xf32>
    %cst = arith.constant dense<0.000000e+00> : vector<64x32xf32>
    %3 = tpu.matmul %1, %2, %cst {dimension_numbers = #tpu.dot_dimension_numbers<[1], [0], [0], [1], [0, 0, 1, 1], [], []>} : vector<64x16xf32>, vector<16x32xf32>, vector<64x32xf32> -> vector<64x32xf32>
    %c0_4 = arith.constant 0 : index
    %c0_5 = arith.constant 0 : index
    %4 = vector.load %arg3[%c0_4, %c0_5] : memref<1x32xf32, #tpu.memory_space<vmem>>, vector<1x32xf32>
    %5 = vector.broadcast %4 : vector<1x32xf32> to vector<64x32xf32>
    %6 = arith.addf %3, %5 : vector<64x32xf32>
    %7 = vector.shape_cast %6 : vector<64x32xf32> to vector<8x8x32xf32>
    %c0_6 = arith.constant 0 : index
    %c0_7 = arith.constant 0 : index
    %8 = vector.load %arg2[%c0_6, %c0_7] : memref<32x32xf32, #tpu.memory_space<vmem>>, vector<32x32xf32>
    %cst_8 = arith.constant 0.000000e+00 : f32
    %9 = vector.broadcast %cst_8 : f32 to vector<8x32xf32>
    %10 = vector.extract_strided_slice %7 {offsets = [0, 0, 0], sizes = [8, 1, 32], strides = [1, 1, 1]} : vector<8x8x32xf32> to vector<8x1x32xf32>
    %11 = vector.shape_cast %10 : vector<8x1x32xf32> to vector<8x32xf32>
    %cst_9 = arith.constant dense<0.000000e+00> : vector<8x32xf32>
    %12 = tpu.matmul %9, %8, %cst_9 {dimension_numbers = #tpu.dot_dimension_numbers<[1], [0], [0], [1], [0, 0, 1, 1], [], []>} : vector<8x32xf32>, vector<32x32xf32>, vector<8x32xf32> -> vector<8x32xf32>
    %13 = arith.addf %11, %12 : vector<8x32xf32>
    %14 = math.tanh %13 : vector<8x32xf32>
    %15 = vector.extract_strided_slice %7 {offsets = [0, 1, 0], sizes = [8, 1, 32], strides = [1, 1, 1]} : vector<8x8x32xf32> to vector<8x1x32xf32>
    %16 = vector.shape_cast %15 : vector<8x1x32xf32> to vector<8x32xf32>
    %cst_10 = arith.constant dense<0.000000e+00> : vector<8x32xf32>
    %17 = tpu.matmul %14, %8, %cst_10 {dimension_numbers = #tpu.dot_dimension_numbers<[1], [0], [0], [1], [0, 0, 1, 1], [], []>} : vector<8x32xf32>, vector<32x32xf32>, vector<8x32xf32> -> vector<8x32xf32>
    %18 = arith.addf %16, %17 : vector<8x32xf32>
    %19 = math.tanh %18 : vector<8x32xf32>
    %20 = vector.extract_strided_slice %7 {offsets = [0, 2, 0], sizes = [8, 1, 32], strides = [1, 1, 1]} : vector<8x8x32xf32> to vector<8x1x32xf32>
    %21 = vector.shape_cast %20 : vector<8x1x32xf32> to vector<8x32xf32>
    %cst_11 = arith.constant dense<0.000000e+00> : vector<8x32xf32>
    %22 = tpu.matmul %19, %8, %cst_11 {dimension_numbers = #tpu.dot_dimension_numbers<[1], [0], [0], [1], [0, 0, 1, 1], [], []>} : vector<8x32xf32>, vector<32x32xf32>, vector<8x32xf32> -> vector<8x32xf32>
    %23 = arith.addf %21, %22 : vector<8x32xf32>
    %24 = math.tanh %23 : vector<8x32xf32>
    %25 = vector.extract_strided_slice %7 {offsets = [0, 3, 0], sizes = [8, 1, 32], strides = [1, 1, 1]} : vector<8x8x32xf32> to vector<8x1x32xf32>
    %26 = vector.shape_cast %25 : vector<8x1x32xf32> to vector<8x32xf32>
    %cst_12 = arith.constant dense<0.000000e+00> : vector<8x32xf32>
    %27 = tpu.matmul %24, %8, %cst_12 {dimension_numbers = #tpu.dot_dimension_numbers<[1], [0], [0], [1], [0, 0, 1, 1], [], []>} : vector<8x32xf32>, vector<32x32xf32>, vector<8x32xf32> -> vector<8x32xf32>
    %28 = arith.addf %26, %27 : vector<8x32xf32>
    %29 = math.tanh %28 : vector<8x32xf32>
    %30 = vector.extract_strided_slice %7 {offsets = [0, 4, 0], sizes = [8, 1, 32], strides = [1, 1, 1]} : vector<8x8x32xf32> to vector<8x1x32xf32>
    %31 = vector.shape_cast %30 : vector<8x1x32xf32> to vector<8x32xf32>
    %cst_13 = arith.constant dense<0.000000e+00> : vector<8x32xf32>
    %32 = tpu.matmul %29, %8, %cst_13 {dimension_numbers = #tpu.dot_dimension_numbers<[1], [0], [0], [1], [0, 0, 1, 1], [], []>} : vector<8x32xf32>, vector<32x32xf32>, vector<8x32xf32> -> vector<8x32xf32>
    %33 = arith.addf %31, %32 : vector<8x32xf32>
    %34 = math.tanh %33 : vector<8x32xf32>
    %35 = vector.extract_strided_slice %7 {offsets = [0, 5, 0], sizes = [8, 1, 32], strides = [1, 1, 1]} : vector<8x8x32xf32> to vector<8x1x32xf32>
    %36 = vector.shape_cast %35 : vector<8x1x32xf32> to vector<8x32xf32>
    %cst_14 = arith.constant dense<0.000000e+00> : vector<8x32xf32>
    %37 = tpu.matmul %34, %8, %cst_14 {dimension_numbers = #tpu.dot_dimension_numbers<[1], [0], [0], [1], [0, 0, 1, 1], [], []>} : vector<8x32xf32>, vector<32x32xf32>, vector<8x32xf32> -> vector<8x32xf32>
    %38 = arith.addf %36, %37 : vector<8x32xf32>
    %39 = math.tanh %38 : vector<8x32xf32>
    %40 = vector.extract_strided_slice %7 {offsets = [0, 6, 0], sizes = [8, 1, 32], strides = [1, 1, 1]} : vector<8x8x32xf32> to vector<8x1x32xf32>
    %41 = vector.shape_cast %40 : vector<8x1x32xf32> to vector<8x32xf32>
    %cst_15 = arith.constant dense<0.000000e+00> : vector<8x32xf32>
    %42 = tpu.matmul %39, %8, %cst_15 {dimension_numbers = #tpu.dot_dimension_numbers<[1], [0], [0], [1], [0, 0, 1, 1], [], []>} : vector<8x32xf32>, vector<32x32xf32>, vector<8x32xf32> -> vector<8x32xf32>
    %43 = arith.addf %41, %42 : vector<8x32xf32>
    %44 = math.tanh %43 : vector<8x32xf32>
    %45 = vector.extract_strided_slice %7 {offsets = [0, 7, 0], sizes = [8, 1, 32], strides = [1, 1, 1]} : vector<8x8x32xf32> to vector<8x1x32xf32>
    %46 = vector.shape_cast %45 : vector<8x1x32xf32> to vector<8x32xf32>
    %cst_16 = arith.constant dense<0.000000e+00> : vector<8x32xf32>
    %47 = tpu.matmul %44, %8, %cst_16 {dimension_numbers = #tpu.dot_dimension_numbers<[1], [0], [0], [1], [0, 0, 1, 1], [], []>} : vector<8x32xf32>, vector<32x32xf32>, vector<8x32xf32> -> vector<8x32xf32>
    %48 = arith.addf %46, %47 : vector<8x32xf32>
    %49 = math.tanh %48 : vector<8x32xf32>
    %50 = vector.shape_cast %14 : vector<8x32xf32> to vector<8x1x32xf32>
    %51 = vector.shape_cast %19 : vector<8x32xf32> to vector<8x1x32xf32>
    %52 = vector.shape_cast %24 : vector<8x32xf32> to vector<8x1x32xf32>
    %53 = vector.shape_cast %29 : vector<8x32xf32> to vector<8x1x32xf32>
    %54 = vector.shape_cast %34 : vector<8x32xf32> to vector<8x1x32xf32>
    %55 = vector.shape_cast %39 : vector<8x32xf32> to vector<8x1x32xf32>
    %56 = vector.shape_cast %44 : vector<8x32xf32> to vector<8x1x32xf32>
    %57 = vector.shape_cast %49 : vector<8x32xf32> to vector<8x1x32xf32>
    %58 = tpu.concatenate %50, %51, %52, %53, %54, %55, %56, %57 in 1 : vector<8x1x32xf32>, vector<8x1x32xf32>, vector<8x1x32xf32>, vector<8x1x32xf32>, vector<8x1x32xf32>, vector<8x1x32xf32>, vector<8x1x32xf32>, vector<8x1x32xf32> -> vector<8x8x32xf32>
    %59 = vector.shape_cast %58 : vector<8x8x32xf32> to vector<64x32xf32>
    %c0_17 = arith.constant 0 : index
    %c0_18 = arith.constant 0 : index
    %60 = vector.load %arg4[%c0_17, %c0_18] : memref<32x4xf32, #tpu.memory_space<vmem>>, vector<32x4xf32>
    %cst_19 = arith.constant dense<0.000000e+00> : vector<64x4xf32>
    %61 = tpu.matmul %59, %60, %cst_19 {dimension_numbers = #tpu.dot_dimension_numbers<[1], [0], [0], [1], [0, 0, 1, 1], [], []>} : vector<64x32xf32>, vector<32x4xf32>, vector<64x4xf32> -> vector<64x4xf32>
    %c0_20 = arith.constant 0 : index
    %c0_21 = arith.constant 0 : index
    %62 = vector.load %arg5[%c0_20, %c0_21] : memref<1x4xf32, #tpu.memory_space<vmem>>, vector<1x4xf32>
    %63 = vector.broadcast %62 : vector<1x4xf32> to vector<64x4xf32>
    %64 = arith.addf %61, %63 : vector<64x4xf32>
    %65 = vector.shape_cast %64 : vector<64x4xf32> to vector<8x8x4xf32>
    %c0_22 = arith.constant 0 : index
    %c0_23 = arith.constant 0 : index
    %c0_24 = arith.constant 0 : index
    %66 = vector.load %arg6[%c0_22, %c0_23, %c0_24] : memref<8x8x4xf32, #tpu.memory_space<vmem>>, vector<8x8x4xf32>
    tpu.vector_store %arg6[%c0_22, %c0_23, %c0_24], %65 {strides = array<i32>} : memref<8x8x4xf32, #tpu.memory_space<vmem>>, vector<8x8x4xf32>,
    return
  }
}

</mosaic_0001>

<llo_original>
// kernel: rnn_forward.1
$region0: #{rnn_forward.1}
  #allocation0 [shape = 'u32[]', space=smem, size = 0x4, offset = 0x4, fixed_abs, tag = 'smem constant byte address 0x4 - core index']
  #allocation1 [shape = 'u32[144,128]{1,0:T(1,128)}', space=vmem, size = 0x12000, scoped, tag = 'internal scratch']
  %s0 = inlined_call_operand.vmem [shape: f32[8,8,16], index: 0, kind: input, shape index: {}]
  %s1 = inlined_call_operand.vmem [shape: f32[16,32], index: 1, kind: input, shape index: {}]
  %s2 = inlined_call_operand.vmem [shape: f32[32,32], index: 2, kind: input, shape index: {}]
  %s3 = inlined_call_operand.vmem [shape: f32[1,32], index: 3, kind: input, shape index: {}]
  %s4 = inlined_call_operand.vmem [shape: f32[32,4], index: 4, kind: input, shape index: {}]
  %s5 = inlined_call_operand.vmem [shape: f32[1,4], index: 5, kind: input, shape index: {}]
  %s6 = inlined_call_operand.vmem [shape: f32[8,8,4], index: 6, kind: output, shape index: {}]
  %s7 = sld [smem:[#allocation0]]
  $region34: #{rnn_forward.1} parent=0
    _
  %s9 = ssub.s32 1, %s7
  %s10 = scalar_select 0, %s9, %s7
  // Predicated region
  $region2: #{rnn_forward.1} parent=0 // pred_check
    _
  $region3: #{rnn_forward.1} parent=0 // pred_check_branch
    %12 = sbr.rel (0) target = $region5
  $region4: #{rnn_forward.1} parent=0 // pred_region
    _
  $region5: #{rnn_forward.1} parent=0 // pred_fallthru
    _
  // Predicated region
  $region6: #{rnn_forward.1} parent=0 // pred_check
    _
  $region7: #{rnn_forward.1} parent=0 // pred_check_branch
    %14 = sbr.rel (0) target = $region9
  $region8: #{rnn_forward.1} parent=0 // pred_region
    _
  $region9: #{rnn_forward.1} parent=0 // pred_fallthru
    _
  // Predicated region
  $region10: #{rnn_forward.1} parent=0 // pred_check
    _
  $region11: #{rnn_forward.1} parent=0 // pred_check_branch
    %16 = sbr.rel (0) target = $region13
  $region12: #{rnn_forward.1} parent=0 // pred_region
    _
  $region13: #{rnn_forward.1} parent=0 // pred_fallthru
    _
  // Predicated region
  $region14: #{rnn_forward.1} parent=0 // pred_check
    _
  $region15: #{rnn_forward.1} parent=0 // pred_check_branch
    %18 = sbr.rel (0) target = $region17
  $region16: #{rnn_forward.1} parent=0 // pred_region
    _
  $region17: #{rnn_forward.1} parent=0 // pred_fallthru
    _
  // Predicated region
  $region18: #{rnn_forward.1} parent=0 // pred_check
    _
  $region19: #{rnn_forward.1} parent=0 // pred_check_branch
    %20 = sbr.rel (0) target = $region21
  $region20: #{rnn_forward.1} parent=0 // pred_region
    _
  $region21: #{rnn_forward.1} parent=0 // pred_fallthru
    _
  // Predicated region
  $region22: #{rnn_forward.1} parent=0 // pred_check
    _
  $region23: #{rnn_forward.1} parent=0 // pred_check_branch
    %22 = sbr.rel (0) target = $region25
  $region24: #{rnn_forward.1} parent=0 // pred_region
    _
  $region25: #{rnn_forward.1} parent=0 // pred_fallthru
    _
  %v23 = vld [vmem:[%s0] sm:$0xff]
  %v24 = vld [vmem:[%s0 + $0x8] sm:$0xff]
  %v25 = vld [vmem:[%s0 + $0x10] sm:$0xff]
  %v26 = vld [vmem:[%s0 + $0x18] sm:$0xff]
  %v27 = vld [vmem:[%s0 + $0x20] sm:$0xff]
  %v28 = vld [vmem:[%s0 + $0x28] sm:$0xff]
  %v29 = vld [vmem:[%s0 + $0x30] sm:$0xff]
  %v30 = vld [vmem:[%s0 + $0x38] sm:$0xff]
  %v31 = vld [vmem:[%s1] sm:$0xff]
  %v32 = vld [vmem:[%s1 + $0x8] sm:$0xff]
  %v33 = vld [vmem:[%s3] sm:$0x1]
  %v35 = vlaneseq
  %v36 = vshrl.u32 %v35, 7
  %v37 = vsub.s32 0, %v36
  %v38 = vrot.slane %v33, %v37
  %vm40 = vcmask 130048
  %v42 = vsel %vm40, %v23, 0
  %v45 = vsel %vm40, %v24, 0
  %v48 = vsel %vm40, %v25, 0
  %v51 = vsel %vm40, %v26, 0
  %v54 = vsel %vm40, %v27, 0
  %v57 = vsel %vm40, %v28, 0
  %v60 = vsel %vm40, %v29, 0
  %v63 = vsel %vm40, %v30, 0
  %65 = vmatprep.subr.mxu0 0.0
  %66 = vmatpush1.msra.mxu0 %v31
  %67 = vmatprep.subr.mxu0 0.0
  %68 = vmatpush1.msra.mxu0 %v32
  %69 = vmatprep.subr.mxu0 0.0
  %70 = vmatpush1.msra.mxu0 0.0
  %71 = vmatprep.subr.mxu0 0.0
  %72 = vmatpush1.msra.mxu0 0.0
  %73 = vmatprep.subr.mxu0 0.0
  %74 = vmatpush1.msra.mxu0 0.0
  %75 = vmatprep.subr.mxu0 0.0
  %76 = vmatpush1.msra.mxu0 0.0
  %77 = vmatprep.subr.mxu0 0.0
  %78 = vmatpush1.msra.mxu0 0.0
  %79 = vmatprep.subr.mxu0 0.0
  %80 = vmatpush1.msra.mxu0 0.0
  %81 = vmatprep.subr.mxu0 0.0
  %82 = vmatpush1.msra.mxu0 0.0
  %83 = vmatprep.subr.mxu0 0.0
  %84 = vmatpush1.msra.mxu0 0.0
  %85 = vmatprep.subr.mxu0 0.0
  %86 = vmatpush1.msra.mxu0 0.0
  %87 = vmatprep.subr.mxu0 0.0
  %88 = vmatpush1.msra.mxu0 0.0
  %89 = vmatprep.subr.mxu0 0.0
  %90 = vmatpush1.msra.mxu0 0.0
  %91 = vmatprep.subr.mxu0 0.0
  %92 = vmatpush1.msra.mxu0 0.0
  %93 = vmatprep.subr.mxu0 0.0
  %94 = vmatpush1.msra.mxu0 0.0
  %95 = vmatprep.subr.mxu0 0.0
  %96 = vmatpush1.msra.mxu0 0.0
  %97 = vmatprep.subr.mxu0 0.0
  %98 = vmatpush1.msra.mxu0 0.0
  %99 = vmatprep.subr.mxu0 0.0
  %100 = vmatpush1.msra.mxu0 0.0
  %101 = vmatprep.subr.mxu0 0.0
  %102 = vmatpush1.msra.mxu0 0.0
  %103 = vmatprep.subr.mxu0 0.0
  %104 = vmatpush1.msra.mxu0 0.0
  %105 = vmatprep.subr.mxu0 0.0
  %106 = vmatpush1.msra.mxu0 0.0
  %107 = vmatprep.subr.mxu0 0.0
  %108 = vmatpush1.msra.mxu0 0.0
  %109 = vmatprep.subr.mxu0 0.0
  %110 = vmatpush1.msra.mxu0 0.0
  %111 = vmatprep.subr.mxu0 0.0
  %112 = vmatpush1.msra.mxu0 0.0
  %113 = vmatprep.subr.mxu0 0.0
  %114 = vmatpush1.msra.mxu0 0.0
  %115 = vmatprep.subr.mxu0 0.0
  %116 = vmatpush1.msra.mxu0 0.0
  %117 = vmatprep.subr.mxu0 0.0
  %118 = vmatpush1.msra.mxu0 0.0
  %119 = vmatprep.subr.mxu0 0.0
  %120 = vmatpush1.msra.mxu0 0.0
  %121 = vmatprep.subr.mxu0 0.0
  %122 = vmatpush1.msra.mxu0 0.0
  %123 = vmatprep.subr.mxu0 0.0
  %124 = vmatpush1.msra.mxu0 0.0
  %125 = vmatprep.subr.mxu0 0.0
  %126 = vmatpush1.msra.mxu0 0.0
  %127 = vmatprep.subr.mxu0 0.0
  %128 = vmatpush1.msra.mxu0 0.0
  %129 = vmatprep.mubr.f32.mxu0 0.0
  %130 = vmatmul.mubr.f32.gmra.mrb[0].mxu0 %v42
  %v131 = vpop.f32.mrb[0].mxu0
  %v132 = vadd.f32 %v38, %v131
  %v133 = vpop.f32.mrb[0].mxu0
  %134 = vmatprep.mubr.f32.mxu0 0.0
  %135 = vmatmul.mubr.f32.gmra.mrb[0].mxu0 %v45
  %v136 = vpop.f32.mrb[0].mxu0
  %v137 = vadd.f32 %v38, %v136
  %v138 = vpop.f32.mrb[0].mxu0
  %139 = vmatprep.mubr.f32.mxu0 0.0
  %140 = vmatmul.mubr.f32.gmra.mrb[0].mxu0 %v48
  %v141 = vpop.f32.mrb[0].mxu0
  %v142 = vadd.f32 %v38, %v141
  %v143 = vpop.f32.mrb[0].mxu0
  %144 = vmatprep.mubr.f32.mxu0 0.0
  %145 = vmatmul.mubr.f32.gmra.mrb[0].mxu0 %v51
  %v146 = vpop.f32.mrb[0].mxu0
  %v147 = vadd.f32 %v38, %v146
  %v148 = vpop.f32.mrb[0].mxu0
  %149 = vmatprep.mubr.f32.mxu0 0.0
  %150 = vmatmul.mubr.f32.gmra.mrb[0].mxu0 %v54
  %v151 = vpop.f32.mrb[0].mxu0
  %v152 = vadd.f32 %v38, %v151
  %v153 = vpop.f32.mrb[0].mxu0
  %154 = vmatprep.mubr.f32.mxu0 0.0
  %155 = vmatmul.mubr.f32.gmra.mrb[0].mxu0 %v57
  %v156 = vpop.f32.mrb[0].mxu0
  %v157 = vadd.f32 %v38, %v156
  %v158 = vpop.f32.mrb[0].mxu0
  %159 = vmatprep.mubr.f32.mxu0 0.0
  %160 = vmatmul.mubr.f32.gmra.mrb[0].mxu0 %v60
  %v161 = vpop.f32.mrb[0].mxu0
  %v162 = vadd.f32 %v38, %v161
  %v163 = vpop.f32.mrb[0].mxu0
  %164 = vmatprep.mubr.f32.mxu0 0.0
  %165 = vmatmul.mubr.f32.gmra.mrb[0].mxu0 %v63
  %v166 = vpop.f32.mrb[0].mxu0
  %v167 = vadd.f32 %v38, %v166
  %v168 = vpop.f32.mrb[0].mxu0
  %169 = vdwg.mxu0
  %v170 = vld [vmem:[%s2] sm:$0xff]
  %v171 = vld [vmem:[%s2 + $0x8] sm:$0xff]
  %v172 = vld [vmem:[%s2 + $0x10] sm:$0xff]
  %v173 = vld [vmem:[%s2 + $0x18] sm:$0xff]
  %vm174 = vcmask 261120
  %v176 = vsel %vm174, 0.0, 0
  %178 = vmatprep.subr.mxu0 0.0
  %179 = vmatpush1.msra.mxu0 %v170
  %180 = vmatprep.subr.mxu0 0.0
  %181 = vmatpush1.msra.mxu0 %v171
  %182 = vmatprep.subr.mxu0 0.0
  %183 = vmatpush1.msra.mxu0 %v172
  %184 = vmatprep.subr.mxu0 0.0
  %185 = vmatpush1.msra.mxu0 %v173
  %186 = vmatprep.subr.mxu0 0.0
  %187 = vmatpush1.msra.mxu0 0.0
  %188 = vmatprep.subr.mxu0 0.0
  %189 = vmatpush1.msra.mxu0 0.0
  %190 = vmatprep.subr.mxu0 0.0
  %191 = vmatpush1.msra.mxu0 0.0
  %192 = vmatprep.subr.mxu0 0.0
  %193 = vmatpush1.msra.mxu0 0.0
  %194 = vmatprep.subr.mxu0 0.0
  %195 = vmatpush1.msra.mxu0 0.0
  %196 = vmatprep.subr.mxu0 0.0
  %197 = vmatpush1.msra.mxu0 0.0
  %198 = vmatprep.subr.mxu0 0.0
  %199 = vmatpush1.msra.mxu0 0.0
  %200 = vmatprep.subr.mxu0 0.0
  %201 = vmatpush1.msra.mxu0 0.0
  %202 = vmatprep.subr.mxu0 0.0
  %203 = vmatpush1.msra.mxu0 0.0
  %204 = vmatprep.subr.mxu0 0.0
  %205 = vmatpush1.msra.mxu0 0.0
  %206 = vmatprep.subr.mxu0 0.0
  %207 = vmatpush1.msra.mxu0 0.0
  %208 = vmatprep.subr.mxu0 0.0
  %209 = vmatpush1.msra.mxu0 0.0
  %210 = vmatprep.subr.mxu0 0.0
  %211 = vmatpush1.msra.mxu0 0.0
  %212 = vmatprep.subr.mxu0 0.0
  %213 = vmatpush1.msra.mxu0 0.0
  %214 = vmatprep.subr.mxu0 0.0
  %215 = vmatpush1.msra.mxu0 0.0
  %216 = vmatprep.subr.mxu0 0.0
  %217 = vmatpush1.msra.mxu0 0.0
  %218 = vmatprep.subr.mxu0 0.0
  %219 = vmatpush1.msra.mxu0 0.0
  %220 = vmatprep.subr.mxu0 0.0
  %221 = vmatpush1.msra.mxu0 0.0
  %222 = vmatprep.subr.mxu0 0.0
  %223 = vmatpush1.msra.mxu0 0.0
  %224 = vmatprep.subr.mxu0 0.0
  %225 = vmatpush1.msra.mxu0 0.0
  %226 = vmatprep.subr.mxu0 0.0
  %227 = vmatpush1.msra.mxu0 0.0
  %228 = vmatprep.subr.mxu0 0.0
  %229 = vmatpush1.msra.mxu0 0.0
  %230 = vmatprep.subr.mxu0 0.0
  %231 = vmatpush1.msra.mxu0 0.0
  %232 = vmatprep.subr.mxu0 0.0
  %233 = vmatpush1.msra.mxu0 0.0
  %234 = vmatprep.subr.mxu0 0.0
  %235 = vmatpush1.msra.mxu0 0.0
  %236 = vmatprep.subr.mxu0 0.0
  %237 = vmatpush1.msra.mxu0 0.0
  %238 = vmatprep.subr.mxu0 0.0
  %239 = vmatpush1.msra.mxu0 0.0
  %240 = vmatprep.subr.mxu0 0.0
  %241 = vmatpush1.msra.mxu0 0.0
  %242 = vmatprep.mubr.f32.mxu0 0.0
  %243 = vmatmul.mubr.f32.gmra.mrb[0].mxu0 %v176
  %v244 = vpop.f32.mrb[0].mxu0
  %v245 = vadd.f32 0.0, %v244
  %v246 = vpop.f32.mrb[0].mxu0
  %247 = vdwg.mxu0
  %v249 = vrot.slane %v245, 1
  %v250 = vrot.slane %v245, 2
  %v251 = vrot.slane %v245, 3
  %v252 = vrot.slane %v245, 4
  %v253 = vrot.slane %v245, 5
  %v254 = vrot.slane %v245, 6
  %v255 = vrot.slane %v245, 7
  %v264 = vadd.f32 %v132, %v245
  %v265 = vadd.f32 %v137, %v249
  %v266 = vadd.f32 %v142, %v250
  %v267 = vadd.f32 %v147, %v251
  %v268 = vadd.f32 %v152, %v252
  %v269 = vadd.f32 %v157, %v253
  %v270 = vadd.f32 %v162, %v254
  %v271 = vadd.f32 %v167, %v255
  %v272 = vtanh.pop %v264
  %v273 = vtanh.pop %v265
  %v274 = vtanh.pop %v266
  %v275 = vtanh.pop %v267
  %v276 = vtanh.pop %v268
  %v277 = vtanh.pop %v269
  %v278 = vtanh.pop %v270
  %v279 = vtanh.pop %v271
  %v288 = vrot.slane %v273, 7
  %vm289 = vcmask 1041409
  %v290 = vsel %vm289, %v288, %v272
  %v291 = vrot.slane %v274, 6
  %vm292 = vcmask 1042434
  %v293 = vsel %vm292, %v291, %v290
  %v294 = vrot.slane %v275, 5
  %vm295 = vcmask 1043459
  %v296 = vsel %vm295, %v294, %v293
  %v297 = vrot.slane %v276, 4
  %vm298 = vcmask 1044484
  %v299 = vsel %vm298, %v297, %v296
  %v300 = vrot.slane %v277, 3
  %vm301 = vcmask 1045509
  %v302 = vsel %vm301, %v300, %v299
  %v303 = vrot.slane %v278, 2
  %vm304 = vcmask 1046534
  %v305 = vsel %vm304, %v303, %v302
  %v306 = vrot.slane %v279, 1
  %vm307 = vcmask 1047559
  %v308 = vsel %vm307, %v306, %v305
  %v309 = vsel %vm174, %v308, 0
  %311 = vmatprep.subr.mxu0 0.0
  %312 = vmatpush1.msra.mxu0 %v170
  %313 = vmatprep.subr.mxu0 0.0
  %314 = vmatpush1.msra.mxu0 %v171
  %315 = vmatprep.subr.mxu0 0.0
  %316 = vmatpush1.msra.mxu0 %v172
  %317 = vmatprep.subr.mxu0 0.0
  %318 = vmatpush1.msra.mxu0 %v173
  %319 = vmatprep.subr.mxu0 0.0
  %320 = vmatpush1.msra.mxu0 0.0
  %321 = vmatprep.subr.mxu0 0.0
  %322 = vmatpush1.msra.mxu0 0.0
  %323 = vmatprep.subr.mxu0 0.0
  %324 = vmatpush1.msra.mxu0 0.0
  %325 = vmatprep.subr.mxu0 0.0
  %326 = vmatpush1.msra.mxu0 0.0
  %327 = vmatprep.subr.mxu0 0.0
  %328 = vmatpush1.msra.mxu0 0.0
  %329 = vmatprep.subr.mxu0 0.0
  %330 = vmatpush1.msra.mxu0 0.0
  %331 = vmatprep.subr.mxu0 0.0
  %332 = vmatpush1.msra.mxu0 0.0
  %333 = vmatprep.subr.mxu0 0.0
  %334 = vmatpush1.msra.mxu0 0.0
  %335 = vmatprep.subr.mxu0 0.0
  %336 = vmatpush1.msra.mxu0 0.0
  %337 = vmatprep.subr.mxu0 0.0
  %338 = vmatpush1.msra.mxu0 0.0
  %339 = vmatprep.subr.mxu0 0.0
  %340 = vmatpush1.msra.mxu0 0.0
  %341 = vmatprep.subr.mxu0 0.0
  %342 = vmatpush1.msra.mxu0 0.0
  %343 = vmatprep.subr.mxu0 0.0
  %344 = vmatpush1.msra.mxu0 0.0
  %345 = vmatprep.subr.mxu0 0.0
  %346 = vmatpush1.msra.mxu0 0.0
  %347 = vmatprep.subr.mxu0 0.0
  %348 = vmatpush1.msra.mxu0 0.0
  %349 = vmatprep.subr.mxu0 0.0
  %350 = vmatpush1.msra.mxu0 0.0
  %351 = vmatprep.subr.mxu0 0.0
  %352 = vmatpush1.msra.mxu0 0.0
  %353 = vmatprep.subr.mxu0 0.0
  %354 = vmatpush1.msra.mxu0 0.0
  %355 = vmatprep.subr.mxu0 0.0
  %356 = vmatpush1.msra.mxu0 0.0
  %357 = vmatprep.subr.mxu0 0.0
  %358 = vmatpush1.msra.mxu0 0.0
  %359 = vmatprep.subr.mxu0 0.0
  %360 = vmatpush1.msra.mxu0 0.0
  %361 = vmatprep.subr.mxu0 0.0
  %362 = vmatpush1.msra.mxu0 0.0
  %363 = vmatprep.subr.mxu0 0.0
  %364 = vmatpush1.msra.mxu0 0.0
  %365 = vmatprep.subr.mxu0 0.0
  %366 = vmatpush1.msra.mxu0 0.0
  %367 = vmatprep.subr.mxu0 0.0
  %368 = vmatpush1.msra.mxu0 0.0
  %369 = vmatprep.subr.mxu0 0.0
  %370 = vmatpush1.msra.mxu0 0.0
  %371 = vmatprep.subr.mxu0 0.0
  %372 = vmatpush1.msra.mxu0 0.0
  %373 = vmatprep.subr.mxu0 0.0
  %374 = vmatpush1.msra.mxu0 0.0
  %375 = vmatprep.mubr.f32.mxu0 0.0
  %376 = vmatmul.mubr.f32.gmra.mrb[0].mxu0 %v309
  %v377 = vpop.f32.mrb[0].mxu0
  %v378 = vadd.f32 0.0, %v377
  %v379 = vpop.f32.mrb[0].mxu0
  %380 = vdwg.mxu0
  %v382 = vrot.slane %v378, 7
  %v383 = vrot.slane %v378, 1
  %v384 = vrot.slane %v378, 2
  %v385 = vrot.slane %v378, 3
  %v386 = vrot.slane %v378, 4
  %v387 = vrot.slane %v378, 5
  %v388 = vrot.slane %v378, 6
  %v397 = vadd.f32 %v132, %v382
  %v398 = vadd.f32 %v137, %v378
  %v399 = vadd.f32 %v142, %v383
  %v400 = vadd.f32 %v147, %v384
  %v401 = vadd.f32 %v152, %v385
  %v402 = vadd.f32 %v157, %v386
  %v403 = vadd.f32 %v162, %v387
  %v404 = vadd.f32 %v167, %v388
  %v405 = vtanh.pop %v397
  %v406 = vtanh.pop %v398
  %v407 = vtanh.pop %v399
  %v408 = vtanh.pop %v400
  %v409 = vtanh.pop %v401
  %v410 = vtanh.pop %v402
  %v411 = vtanh.pop %v403
  %v412 = vtanh.pop %v404
  %v421 = vrot.slane %v405, 1
  %v422 = vsel %vm289, %v406, %v421
  %v423 = vrot.slane %v407, 7
  %v424 = vsel %vm292, %v423, %v422
  %v425 = vrot.slane %v408, 6
  %v426 = vsel %vm295, %v425, %v424
  %v427 = vrot.slane %v409, 5
  %v428 = vsel %vm298, %v427, %v426
  %v429 = vrot.slane %v410, 4
  %v430 = vsel %vm301, %v429, %v428
  %v431 = vrot.slane %v411, 3
  %v432 = vsel %vm304, %v431, %v430
  %v433 = vrot.slane %v412, 2
  %v434 = vsel %vm307, %v433, %v432
  %v435 = vsel %vm174, %v434, 0
  %437 = vmatprep.subr.mxu0 0.0
  %438 = vmatpush1.msra.mxu0 %v170
  %439 = vmatprep.subr.mxu0 0.0
  %440 = vmatpush1.msra.mxu0 %v171
  %441 = vmatprep.subr.mxu0 0.0
  %442 = vmatpush1.msra.mxu0 %v172
  %443 = vmatprep.subr.mxu0 0.0
  %444 = vmatpush1.msra.mxu0 %v173
  %445 = vmatprep.subr.mxu0 0.0
  %446 = vmatpush1.msra.mxu0 0.0
  %447 = vmatprep.subr.mxu0 0.0
  %448 = vmatpush1.msra.mxu0 0.0
  %449 = vmatprep.subr.mxu0 0.0
  %450 = vmatpush1.msra.mxu0 0.0
  %451 = vmatprep.subr.mxu0 0.0
  %452 = vmatpush1.msra.mxu0 0.0
  %453 = vmatprep.subr.mxu0 0.0
  %454 = vmatpush1.msra.mxu0 0.0
  %455 = vmatprep.subr.mxu0 0.0
  %456 = vmatpush1.msra.mxu0 0.0
  %457 = vmatprep.subr.mxu0 0.0
  %458 = vmatpush1.msra.mxu0 0.0
  %459 = vmatprep.subr.mxu0 0.0
  %460 = vmatpush1.msra.mxu0 0.0
  %461 = vmatprep.subr.mxu0 0.0
  %462 = vmatpush1.msra.mxu0 0.0
  %463 = vmatprep.subr.mxu0 0.0
  %464 = vmatpush1.msra.mxu0 0.0
  %465 = vmatprep.subr.mxu0 0.0
  %466 = vmatpush1.msra.mxu0 0.0
  %467 = vmatprep.subr.mxu0 0.0
  %468 = vmatpush1.msra.mxu0 0.0
  %469 = vmatprep.subr.mxu0 0.0
  %470 = vmatpush1.msra.mxu0 0.0
  %471 = vmatprep.subr.mxu0 0.0
  %472 = vmatpush1.msra.mxu0 0.0
  %473 = vmatprep.subr.mxu0 0.0
  %474 = vmatpush1.msra.mxu0 0.0
  %475 = vmatprep.subr.mxu0 0.0
  %476 = vmatpush1.msra.mxu0 0.0
  %477 = vmatprep.subr.mxu0 0.0
  %478 = vmatpush1.msra.mxu0 0.0
  %479 = vmatprep.subr.mxu0 0.0
  %480 = vmatpush1.msra.mxu0 0.0
  %481 = vmatprep.subr.mxu0 0.0
  %482 = vmatpush1.msra.mxu0 0.0
  %483 = vmatprep.subr.mxu0 0.0
  %484 = vmatpush1.msra.mxu0 0.0
  %485 = vmatprep.subr.mxu0 0.0
  %486 = vmatpush1.msra.mxu0 0.0
  %487 = vmatprep.subr.mxu0 0.0
  %488 = vmatpush1.msra.mxu0 0.0
  %489 = vmatprep.subr.mxu0 0.0
  %490 = vmatpush1.msra.mxu0 0.0
  %491 = vmatprep.subr.mxu0 0.0
  %492 = vmatpush1.msra.mxu0 0.0
  %493 = vmatprep.subr.mxu0 0.0
  %494 = vmatpush1.msra.mxu0 0.0
  %495 = vmatprep.subr.mxu0 0.0
  %496 = vmatpush1.msra.mxu0 0.0
  %497 = vmatprep.subr.mxu0 0.0
  %498 = vmatpush1.msra.mxu0 0.0
  %499 = vmatprep.subr.mxu0 0.0
  %500 = vmatpush1.msra.mxu0 0.0
  %501 = vmatprep.mubr.f32.mxu0 0.0
  %502 = vmatmul.mubr.f32.gmra.mrb[0].mxu0 %v435
  %v503 = vpop.f32.mrb[0].mxu0
  %v504 = vadd.f32 0.0, %v503
  %v505 = vpop.f32.mrb[0].mxu0
  %506 = vdwg.mxu0
  %v508 = vrot.slane %v504, 6
  %v509 = vrot.slane %v504, 7
  %v510 = vrot.slane %v504, 1
  %v511 = vrot.slane %v504, 2
  %v512 = vrot.slane %v504, 3
  %v513 = vrot.slane %v504, 4
  %v514 = vrot.slane %v504, 5
  %v523 = vadd.f32 %v132, %v508
  %v524 = vadd.f32 %v137, %v509
  %v525 = vadd.f32 %v142, %v504
  %v526 = vadd.f32 %v147, %v510
  %v527 = vadd.f32 %v152, %v511
  %v528 = vadd.f32 %v157, %v512
  %v529 = vadd.f32 %v162, %v513
  %v530 = vadd.f32 %v167, %v514
  %v531 = vtanh.pop %v523
  %v532 = vtanh.pop %v524
  %v533 = vtanh.pop %v525
  %v534 = vtanh.pop %v526
  %v535 = vtanh.pop %v527
  %v536 = vtanh.pop %v528
  %v537 = vtanh.pop %v529
  %v538 = vtanh.pop %v530
  %v547 = vrot.slane %v531, 2
  %v548 = vrot.slane %v532, 1
  %v549 = vsel %vm289, %v548, %v547
  %v550 = vsel %vm292, %v533, %v549
  %v551 = vrot.slane %v534, 7
  %v552 = vsel %vm295, %v551, %v550
  %v553 = vrot.slane %v535, 6
  %v554 = vsel %vm298, %v553, %v552
  %v555 = vrot.slane %v536, 5
  %v556 = vsel %vm301, %v555, %v554
  %v557 = vrot.slane %v537, 4
  %v558 = vsel %vm304, %v557, %v556
  %v559 = vrot.slane %v538, 3
  %v560 = vsel %vm307, %v559, %v558
  %v561 = vsel %vm174, %v560, 0
  %563 = vmatprep.subr.mxu0 0.0
  %564 = vmatpush1.msra.mxu0 %v170
  %565 = vmatprep.subr.mxu0 0.0
  %566 = vmatpush1.msra.mxu0 %v171
  %567 = vmatprep.subr.mxu0 0.0
  %568 = vmatpush1.msra.mxu0 %v172
  %569 = vmatprep.subr.mxu0 0.0
  %570 = vmatpush1.msra.mxu0 %v173
  %571 = vmatprep.subr.mxu0 0.0
  %572 = vmatpush1.msra.mxu0 0.0
  %573 = vmatprep.subr.mxu0 0.0
  %574 = vmatpush1.msra.mxu0 0.0
  %575 = vmatprep.subr.mxu0 0.0
  %576 = vmatpush1.msra.mxu0 0.0
  %577 = vmatprep.subr.mxu0 0.0
  %578 = vmatpush1.msra.mxu0 0.0
  %579 = vmatprep.subr.mxu0 0.0
  %580 = vmatpush1.msra.mxu0 0.0
  %581 = vmatprep.subr.mxu0 0.0
  %582 = vmatpush1.msra.mxu0 0.0
  %583 = vmatprep.subr.mxu0 0.0
  %584 = vmatpush1.msra.mxu0 0.0
  %585 = vmatprep.subr.mxu0 0.0
  %586 = vmatpush1.msra.mxu0 0.0
  %587 = vmatprep.subr.mxu0 0.0
  %588 = vmatpush1.msra.mxu0 0.0
  %589 = vmatprep.subr.mxu0 0.0
  %590 = vmatpush1.msra.mxu0 0.0
  %591 = vmatprep.subr.mxu0 0.0
  %592 = vmatpush1.msra.mxu0 0.0
  %593 = vmatprep.subr.mxu0 0.0
  %594 = vmatpush1.msra.mxu0 0.0
  %595 = vmatprep.subr.mxu0 0.0
  %596 = vmatpush1.msra.mxu0 0.0
  %597 = vmatprep.subr.mxu0 0.0
  %598 = vmatpush1.msra.mxu0 0.0
  %599 = vmatprep.subr.mxu0 0.0
  %600 = vmatpush1.msra.mxu0 0.0
  %601 = vmatprep.subr.mxu0 0.0
  %602 = vmatpush1.msra.mxu0 0.0
  %603 = vmatprep.subr.mxu0 0.0
  %604 = vmatpush1.msra.mxu0 0.0
  %605 = vmatprep.subr.mxu0 0.0
  %606 = vmatpush1.msra.mxu0 0.0
  %607 = vmatprep.subr.mxu0 0.0
  %608 = vmatpush1.msra.mxu0 0.0
  %609 = vmatprep.subr.mxu0 0.0
  %610 = vmatpush1.msra.mxu0 0.0
  %611 = vmatprep.subr.mxu0 0.0
  %612 = vmatpush1.msra.mxu0 0.0
  %613 = vmatprep.subr.mxu0 0.0
  %614 = vmatpush1.msra.mxu0 0.0
  %615 = vmatprep.subr.mxu0 0.0
  %616 = vmatpush1.msra.mxu0 0.0
  %617 = vmatprep.subr.mxu0 0.0
  %618 = vmatpush1.msra.mxu0 0.0
  %619 = vmatprep.subr.mxu0 0.0
  %620 = vmatpush1.msra.mxu0 0.0
  %621 = vmatprep.subr.mxu0 0.0
  %622 = vmatpush1.msra.mxu0 0.0
  %623 = vmatprep.subr.mxu0 0.0
  %624 = vmatpush1.msra.mxu0 0.0
  %625 = vmatprep.subr.mxu0 0.0
  %626 = vmatpush1.msra.mxu0 0.0
  %627 = vmatprep.mubr.f32.mxu0 0.0
  %628 = vmatmul.mubr.f32.gmra.mrb[0].mxu0 %v561
  %v629 = vpop.f32.mrb[0].mxu0
  %v630 = vadd.f32 0.0, %v629
  %v631 = vpop.f32.mrb[0].mxu0
  %632 = vdwg.mxu0
  %v634 = vrot.slane %v630, 5
  %v635 = vrot.slane %v630, 6
  %v636 = vrot.slane %v630, 7
  %v637 = vrot.slane %v630, 1
  %v638 = vrot.slane %v630, 2
  %v639 = vrot.slane %v630, 3
  %v640 = vrot.slane %v630, 4
  %v649 = vadd.f32 %v132, %v634
  %v650 = vadd.f32 %v137, %v635
  %v651 = vadd.f32 %v142, %v636
  %v652 = vadd.f32 %v147, %v630
  %v653 = vadd.f32 %v152, %v637
  %v654 = vadd.f32 %v157, %v638
  %v655 = vadd.f32 %v162, %v639
  %v656 = vadd.f32 %v167, %v640
  %v657 = vtanh.pop %v649
  %v658 = vtanh.pop %v650
  %v659 = vtanh.pop %v651
  %v660 = vtanh.pop %v652
  %v661 = vtanh.pop %v653
  %v662 = vtanh.pop %v654
  %v663 = vtanh.pop %v655
  %v664 = vtanh.pop %v656
  %v673 = vrot.slane %v657, 3
  %v674 = vrot.slane %v658, 2
  %v675 = vsel %vm289, %v674, %v673
  %v676 = vrot.slane %v659, 1
  %v677 = vsel %vm292, %v676, %v675
  %v678 = vsel %vm295, %v660, %v677
  %v679 = vrot.slane %v661, 7
  %v680 = vsel %vm298, %v679, %v678
  %v681 = vrot.slane %v662, 6
  %v682 = vsel %vm301, %v681, %v680
  %v683 = vrot.slane %v663, 5
  %v684 = vsel %vm304, %v683, %v682
  %v685 = vrot.slane %v664, 4
  %v686 = vsel %vm307, %v685, %v684
  %v687 = vsel %vm174, %v686, 0
  %689 = vmatprep.subr.mxu0 0.0
  %690 = vmatpush1.msra.mxu0 %v170
  %691 = vmatprep.subr.mxu0 0.0
  %692 = vmatpush1.msra.mxu0 %v171
  %693 = vmatprep.subr.mxu0 0.0
  %694 = vmatpush1.msra.mxu0 %v172
  %695 = vmatprep.subr.mxu0 0.0
  %696 = vmatpush1.msra.mxu0 %v173
  %697 = vmatprep.subr.mxu0 0.0
  %698 = vmatpush1.msra.mxu0 0.0
  %699 = vmatprep.subr.mxu0 0.0
  %700 = vmatpush1.msra.mxu0 0.0
  %701 = vmatprep.subr.mxu0 0.0
  %702 = vmatpush1.msra.mxu0 0.0
  %703 = vmatprep.subr.mxu0 0.0
  %704 = vmatpush1.msra.mxu0 0.0
  %705 = vmatprep.subr.mxu0 0.0
  %706 = vmatpush1.msra.mxu0 0.0
  %707 = vmatprep.subr.mxu0 0.0
  %708 = vmatpush1.msra.mxu0 0.0
  %709 = vmatprep.subr.mxu0 0.0
  %710 = vmatpush1.msra.mxu0 0.0
  %711 = vmatprep.subr.mxu0 0.0
  %712 = vmatpush1.msra.mxu0 0.0
  %713 = vmatprep.subr.mxu0 0.0
  %714 = vmatpush1.msra.mxu0 0.0
  %715 = vmatprep.subr.mxu0 0.0
  %716 = vmatpush1.msra.mxu0 0.0
  %717 = vmatprep.subr.mxu0 0.0
  %718 = vmatpush1.msra.mxu0 0.0
  %719 = vmatprep.subr.mxu0 0.0
  %720 = vmatpush1.msra.mxu0 0.0
  %721 = vmatprep.subr.mxu0 0.0
  %722 = vmatpush1.msra.mxu0 0.0
  %723 = vmatprep.subr.mxu0 0.0
  %724 = vmatpush1.msra.mxu0 0.0
  %725 = vmatprep.subr.mxu0 0.0
  %726 = vmatpush1.msra.mxu0 0.0
  %727 = vmatprep.subr.mxu0 0.0
  %728 = vmatpush1.msra.mxu0 0.0
  %729 = vmatprep.subr.mxu0 0.0
  %730 = vmatpush1.msra.mxu0 0.0
  %731 = vmatprep.subr.mxu0 0.0
  %732 = vmatpush1.msra.mxu0 0.0
  %733 = vmatprep.subr.mxu0 0.0
  %734 = vmatpush1.msra.mxu0 0.0
  %735 = vmatprep.subr.mxu0 0.0
  %736 = vmatpush1.msra.mxu0 0.0
  %737 = vmatprep.subr.mxu0 0.0
  %738 = vmatpush1.msra.mxu0 0.0
  %739 = vmatprep.subr.mxu0 0.0
  %740 = vmatpush1.msra.mxu0 0.0
  %741 = vmatprep.subr.mxu0 0.0
  %742 = vmatpush1.msra.mxu0 0.0
  %743 = vmatprep.subr.mxu0 0.0
  %744 = vmatpush1.msra.mxu0 0.0
  %745 = vmatprep.subr.mxu0 0.0
  %746 = vmatpush1.msra.mxu0 0.0
  %747 = vmatprep.subr.mxu0 0.0
  %748 = vmatpush1.msra.mxu0 0.0
  %749 = vmatprep.subr.mxu0 0.0
  %750 = vmatpush1.msra.mxu0 0.0
  %751 = vmatprep.subr.mxu0 0.0
  %752 = vmatpush1.msra.mxu0 0.0
  %753 = vmatprep.mubr.f32.mxu0 0.0
  %754 = vmatmul.mubr.f32.gmra.mrb[0].mxu0 %v687
  %v755 = vpop.f32.mrb[0].mxu0
  %v756 = vadd.f32 0.0, %v755
  %v757 = vpop.f32.mrb[0].mxu0
  %758 = vdwg.mxu0
  %v760 = vrot.slane %v756, 4
  %v761 = vrot.slane %v756, 5
  %v762 = vrot.slane %v756, 6
  %v763 = vrot.slane %v756, 7
  %v764 = vrot.slane %v756, 1
  %v765 = vrot.slane %v756, 2
  %v766 = vrot.slane %v756, 3
  %v775 = vadd.f32 %v132, %v760
  %v776 = vadd.f32 %v137, %v761
  %v777 = vadd.f32 %v142, %v762
  %v778 = vadd.f32 %v147, %v763
  %v779 = vadd.f32 %v152, %v756
  %v780 = vadd.f32 %v157, %v764
  %v781 = vadd.f32 %v162, %v765
  %v782 = vadd.f32 %v167, %v766
  %v783 = vtanh.pop %v775
  %v784 = vtanh.pop %v776
  %v785 = vtanh.pop %v777
  %v786 = vtanh.pop %v778
  %v787 = vtanh.pop %v779
  %v788 = vtanh.pop %v780
  %v789 = vtanh.pop %v781
  %v790 = vtanh.pop %v782
  %v799 = vrot.slane %v783, 4
  %v800 = vrot.slane %v784, 3
  %v801 = vsel %vm289, %v800, %v799
  %v802 = vrot.slane %v785, 2
  %v803 = vsel %vm292, %v802, %v801
  %v804 = vrot.slane %v786, 1
  %v805 = vsel %vm295, %v804, %v803
  %v806 = vsel %vm298, %v787, %v805
  %v807 = vrot.slane %v788, 7
  %v808 = vsel %vm301, %v807, %v806
  %v809 = vrot.slane %v789, 6
  %v810 = vsel %vm304, %v809, %v808
  %v811 = vrot.slane %v790, 5
  %v812 = vsel %vm307, %v811, %v810
  %v813 = vsel %vm174, %v812, 0
  %815 = vmatprep.subr.mxu0 0.0
  %816 = vmatpush1.msra.mxu0 %v170
  %817 = vmatprep.subr.mxu0 0.0
  %818 = vmatpush1.msra.mxu0 %v171
  %819 = vmatprep.subr.mxu0 0.0
  %820 = vmatpush1.msra.mxu0 %v172
  %821 = vmatprep.subr.mxu0 0.0
  %822 = vmatpush1.msra.mxu0 %v173
  %823 = vmatprep.subr.mxu0 0.0
  %824 = vmatpush1.msra.mxu0 0.0
  %825 = vmatprep.subr.mxu0 0.0
  %826 = vmatpush1.msra.mxu0 0.0
  %827 = vmatprep.subr.mxu0 0.0
  %828 = vmatpush1.msra.mxu0 0.0
  %829 = vmatprep.subr.mxu0 0.0
  %830 = vmatpush1.msra.mxu0 0.0
  %831 = vmatprep.subr.mxu0 0.0
  %832 = vmatpush1.msra.mxu0 0.0
  %833 = vmatprep.subr.mxu0 0.0
  %834 = vmatpush1.msra.mxu0 0.0
  %835 = vmatprep.subr.mxu0 0.0
  %836 = vmatpush1.msra.mxu0 0.0
  %837 = vmatprep.subr.mxu0 0.0
  %838 = vmatpush1.msra.mxu0 0.0
  %839 = vmatprep.subr.mxu0 0.0
  %840 = vmatpush1.msra.mxu0 0.0
  %841 = vmatprep.subr.mxu0 0.0
  %842 = vmatpush1.msra.mxu0 0.0
  %843 = vmatprep.subr.mxu0 0.0
  %844 = vmatpush1.msra.mxu0 0.0
  %845 = vmatprep.subr.mxu0 0.0
  %846 = vmatpush1.msra.mxu0 0.0
  %847 = vmatprep.subr.mxu0 0.0
  %848 = vmatpush1.msra.mxu0 0.0
  %849 = vmatprep.subr.mxu0 0.0
  %850 = vmatpush1.msra.mxu0 0.0
  %851 = vmatprep.subr.mxu0 0.0
  %852 = vmatpush1.msra.mxu0 0.0
  %853 = vmatprep.subr.mxu0 0.0
  %854 = vmatpush1.msra.mxu0 0.0
  %855 = vmatprep.subr.mxu0 0.0
  %856 = vmatpush1.msra.mxu0 0.0
  %857 = vmatprep.subr.mxu0 0.0
  %858 = vmatpush1.msra.mxu0 0.0
  %859 = vmatprep.subr.mxu0 0.0
  %860 = vmatpush1.msra.mxu0 0.0
  %861 = vmatprep.subr.mxu0 0.0
  %862 = vmatpush1.msra.mxu0 0.0
  %863 = vmatprep.subr.mxu0 0.0
  %864 = vmatpush1.msra.mxu0 0.0
  %865 = vmatprep.subr.mxu0 0.0
  %866 = vmatpush1.msra.mxu0 0.0
  %867 = vmatprep.subr.mxu0 0.0
  %868 = vmatpush1.msra.mxu0 0.0
  %869 = vmatprep.subr.mxu0 0.0
  %870 = vmatpush1.msra.mxu0 0.0
  %871 = vmatprep.subr.mxu0 0.0
  %872 = vmatpush1.msra.mxu0 0.0
  %873 = vmatprep.subr.mxu0 0.0
  %874 = vmatpush1.msra.mxu0 0.0
  %875 = vmatprep.subr.mxu0 0.0
  %876 = vmatpush1.msra.mxu0 0.0
  %877 = vmatprep.subr.mxu0 0.0
  %878 = vmatpush1.msra.mxu0 0.0
  %879 = vmatprep.mubr.f32.mxu0 0.0
  %880 = vmatmul.mubr.f32.gmra.mrb[0].mxu0 %v813
  %v881 = vpop.f32.mrb[0].mxu0
  %v882 = vadd.f32 0.0, %v881
  %v883 = vpop.f32.mrb[0].mxu0
  %884 = vdwg.mxu0
  %v886 = vrot.slane %v882, 3
  %v887 = vrot.slane %v882, 4
  %v888 = vrot.slane %v882, 5
  %v889 = vrot.slane %v882, 6
  %v890 = vrot.slane %v882, 7
  %v891 = vrot.slane %v882, 1
  %v892 = vrot.slane %v882, 2
  %v901 = vadd.f32 %v132, %v886
  %v902 = vadd.f32 %v137, %v887
  %v903 = vadd.f32 %v142, %v888
  %v904 = vadd.f32 %v147, %v889
  %v905 = vadd.f32 %v152, %v890
  %v906 = vadd.f32 %v157, %v882
  %v907 = vadd.f32 %v162, %v891
  %v908 = vadd.f32 %v167, %v892
  %v909 = vtanh.pop %v901
  %v910 = vtanh.pop %v902
  %v911 = vtanh.pop %v903
  %v912 = vtanh.pop %v904
  %v913 = vtanh.pop %v905
  %v914 = vtanh.pop %v906
  %v915 = vtanh.pop %v907
  %v916 = vtanh.pop %v908
  %v925 = vrot.slane %v909, 5
  %v926 = vrot.slane %v910, 4
  %v927 = vsel %vm289, %v926, %v925
  %v928 = vrot.slane %v911, 3
  %v929 = vsel %vm292, %v928, %v927
  %v930 = vrot.slane %v912, 2
  %v931 = vsel %vm295, %v930, %v929
  %v932 = vrot.slane %v913, 1
  %v933 = vsel %vm298, %v932, %v931
  %v934 = vsel %vm301, %v914, %v933
  %v935 = vrot.slane %v915, 7
  %v936 = vsel %vm304, %v935, %v934
  %v937 = vrot.slane %v916, 6
  %v938 = vsel %vm307, %v937, %v936
  %v939 = vsel %vm174, %v938, 0
  %941 = vmatprep.subr.mxu0 0.0
  %942 = vmatpush1.msra.mxu0 %v170
  %943 = vmatprep.subr.mxu0 0.0
  %944 = vmatpush1.msra.mxu0 %v171
  %945 = vmatprep.subr.mxu0 0.0
  %946 = vmatpush1.msra.mxu0 %v172
  %947 = vmatprep.subr.mxu0 0.0
  %948 = vmatpush1.msra.mxu0 %v173
  %949 = vmatprep.subr.mxu0 0.0
  %950 = vmatpush1.msra.mxu0 0.0
  %951 = vmatprep.subr.mxu0 0.0
  %952 = vmatpush1.msra.mxu0 0.0
  %953 = vmatprep.subr.mxu0 0.0
  %954 = vmatpush1.msra.mxu0 0.0
  %955 = vmatprep.subr.mxu0 0.0
  %956 = vmatpush1.msra.mxu0 0.0
  %957 = vmatprep.subr.mxu0 0.0
  %958 = vmatpush1.msra.mxu0 0.0
  %959 = vmatprep.subr.mxu0 0.0
  %960 = vmatpush1.msra.mxu0 0.0
  %961 = vmatprep.subr.mxu0 0.0
  %962 = vmatpush1.msra.mxu0 0.0
  %963 = vmatprep.subr.mxu0 0.0
  %964 = vmatpush1.msra.mxu0 0.0
  %965 = vmatprep.subr.mxu0 0.0
  %966 = vmatpush1.msra.mxu0 0.0
  %967 = vmatprep.subr.mxu0 0.0
  %968 = vmatpush1.msra.mxu0 0.0
  %969 = vmatprep.subr.mxu0 0.0
  %970 = vmatpush1.msra.mxu0 0.0
  %971 = vmatprep.subr.mxu0 0.0
  %972 = vmatpush1.msra.mxu0 0.0
  %973 = vmatprep.subr.mxu0 0.0
  %974 = vmatpush1.msra.mxu0 0.0
  %975 = vmatprep.subr.mxu0 0.0
  %976 = vmatpush1.msra.mxu0 0.0
  %977 = vmatprep.subr.mxu0 0.0
  %978 = vmatpush1.msra.mxu0 0.0
  %979 = vmatprep.subr.mxu0 0.0
  %980 = vmatpush1.msra.mxu0 0.0
  %981 = vmatprep.subr.mxu0 0.0
  %982 = vmatpush1.msra.mxu0 0.0
  %983 = vmatprep.subr.mxu0 0.0
  %984 = vmatpush1.msra.mxu0 0.0
  %985 = vmatprep.subr.mxu0 0.0
  %986 = vmatpush1.msra.mxu0 0.0
  %987 = vmatprep.subr.mxu0 0.0
  %988 = vmatpush1.msra.mxu0 0.0
  %989 = vmatprep.subr.mxu0 0.0
  %990 = vmatpush1.msra.mxu0 0.0
  %991 = vmatprep.subr.mxu0 0.0
  %992 = vmatpush1.msra.mxu0 0.0
  %993 = vmatprep.subr.mxu0 0.0
  %994 = vmatpush1.msra.mxu0 0.0
  %995 = vmatprep.subr.mxu0 0.0
  %996 = vmatpush1.msra.mxu0 0.0
  %997 = vmatprep.subr.mxu0 0.0
  %998 = vmatpush1.msra.mxu0 0.0
  %999 = vmatprep.subr.mxu0 0.0
  %1000 = vmatpush1.msra.mxu0 0.0
  %1001 = vmatprep.subr.mxu0 0.0
  %1002 = vmatpush1.msra.mxu0 0.0
  %1003 = vmatprep.subr.mxu0 0.0
  %1004 = vmatpush1.msra.mxu0 0.0
  %1005 = vmatprep.mubr.f32.mxu0 0.0
  %1006 = vmatmul.mubr.f32.gmra.mrb[0].mxu0 %v939
  %v1007 = vpop.f32.mrb[0].mxu0
  %v1008 = vadd.f32 0.0, %v1007
  %v1009 = vpop.f32.mrb[0].mxu0
  %1010 = vdwg.mxu0
  %v1012 = vrot.slane %v1008, 2
  %v1013 = vrot.slane %v1008, 3
  %v1014 = vrot.slane %v1008, 4
  %v1015 = vrot.slane %v1008, 5
  %v1016 = vrot.slane %v1008, 6
  %v1017 = vrot.slane %v1008, 7
  %v1018 = vrot.slane %v1008, 1
  %v1027 = vadd.f32 %v132, %v1012
  %v1028 = vadd.f32 %v137, %v1013
  %v1029 = vadd.f32 %v142, %v1014
  %v1030 = vadd.f32 %v147, %v1015
  %v1031 = vadd.f32 %v152, %v1016
  %v1032 = vadd.f32 %v157, %v1017
  %v1033 = vadd.f32 %v162, %v1008
  %v1034 = vadd.f32 %v167, %v1018
  %v1035 = vtanh.pop %v1027
  %v1036 = vtanh.pop %v1028
  %v1037 = vtanh.pop %v1029
  %v1038 = vtanh.pop %v1030
  %v1039 = vtanh.pop %v1031
  %v1040 = vtanh.pop %v1032
  %v1041 = vtanh.pop %v1033
  %v1042 = vtanh.pop %v1034
  %v1051 = vrot.slane %v1035, 6
  %v1052 = vrot.slane %v1036, 5
  %v1053 = vsel %vm289, %v1052, %v1051
  %v1054 = vrot.slane %v1037, 4
  %v1055 = vsel %vm292, %v1054, %v1053
  %v1056 = vrot.slane %v1038, 3
  %v1057 = vsel %vm295, %v1056, %v1055
  %v1058 = vrot.slane %v1039, 2
  %v1059 = vsel %vm298, %v1058, %v1057
  %v1060 = vrot.slane %v1040, 1
  %v1061 = vsel %vm301, %v1060, %v1059
  %v1062 = vsel %vm304, %v1041, %v1061
  %v1063 = vrot.slane %v1042, 7
  %v1064 = vsel %vm307, %v1063, %v1062
  %v1065 = vsel %vm174, %v1064, 0
  %1067 = vmatprep.subr.mxu0 0.0
  %1068 = vmatpush1.msra.mxu0 %v170
  %1069 = vmatprep.subr.mxu0 0.0
  %1070 = vmatpush1.msra.mxu0 %v171
  %1071 = vmatprep.subr.mxu0 0.0
  %1072 = vmatpush1.msra.mxu0 %v172
  %1073 = vmatprep.subr.mxu0 0.0
  %1074 = vmatpush1.msra.mxu0 %v173
  %1075 = vmatprep.subr.mxu0 0.0
  %1076 = vmatpush1.msra.mxu0 0.0
  %1077 = vmatprep.subr.mxu0 0.0
  %1078 = vmatpush1.msra.mxu0 0.0
  %1079 = vmatprep.subr.mxu0 0.0
  %1080 = vmatpush1.msra.mxu0 0.0
  %1081 = vmatprep.subr.mxu0 0.0
  %1082 = vmatpush1.msra.mxu0 0.0
  %1083 = vmatprep.subr.mxu0 0.0
  %1084 = vmatpush1.msra.mxu0 0.0
  %1085 = vmatprep.subr.mxu0 0.0
  %1086 = vmatpush1.msra.mxu0 0.0
  %1087 = vmatprep.subr.mxu0 0.0
  %1088 = vmatpush1.msra.mxu0 0.0
  %1089 = vmatprep.subr.mxu0 0.0
  %1090 = vmatpush1.msra.mxu0 0.0
  %1091 = vmatprep.subr.mxu0 0.0
  %1092 = vmatpush1.msra.mxu0 0.0
  %1093 = vmatprep.subr.mxu0 0.0
  %1094 = vmatpush1.msra.mxu0 0.0
  %1095 = vmatprep.subr.mxu0 0.0
  %1096 = vmatpush1.msra.mxu0 0.0
  %1097 = vmatprep.subr.mxu0 0.0
  %1098 = vmatpush1.msra.mxu0 0.0
  %1099 = vmatprep.subr.mxu0 0.0
  %1100 = vmatpush1.msra.mxu0 0.0
  %1101 = vmatprep.subr.mxu0 0.0
  %1102 = vmatpush1.msra.mxu0 0.0
  %1103 = vmatprep.subr.mxu0 0.0
  %1104 = vmatpush1.msra.mxu0 0.0
  %1105 = vmatprep.subr.mxu0 0.0
  %1106 = vmatpush1.msra.mxu0 0.0
  %1107 = vmatprep.subr.mxu0 0.0
  %1108 = vmatpush1.msra.mxu0 0.0
  %1109 = vmatprep.subr.mxu0 0.0
  %1110 = vmatpush1.msra.mxu0 0.0
  %1111 = vmatprep.subr.mxu0 0.0
  %1112 = vmatpush1.msra.mxu0 0.0
  %1113 = vmatprep.subr.mxu0 0.0
  %1114 = vmatpush1.msra.mxu0 0.0
  %1115 = vmatprep.subr.mxu0 0.0
  %1116 = vmatpush1.msra.mxu0 0.0
  %1117 = vmatprep.subr.mxu0 0.0
  %1118 = vmatpush1.msra.mxu0 0.0
  %1119 = vmatprep.subr.mxu0 0.0
  %1120 = vmatpush1.msra.mxu0 0.0
  %1121 = vmatprep.subr.mxu0 0.0
  %1122 = vmatpush1.msra.mxu0 0.0
  %1123 = vmatprep.subr.mxu0 0.0
  %1124 = vmatpush1.msra.mxu0 0.0
  %1125 = vmatprep.subr.mxu0 0.0
  %1126 = vmatpush1.msra.mxu0 0.0
  %1127 = vmatprep.subr.mxu0 0.0
  %1128 = vmatpush1.msra.mxu0 0.0
  %1129 = vmatprep.subr.mxu0 0.0
  %1130 = vmatpush1.msra.mxu0 0.0
  %1131 = vmatprep.mubr.f32.mxu0 0.0
  %1132 = vmatmul.mubr.f32.gmra.mrb[0].mxu0 %v1065
  %v1133 = vpop.f32.mrb[0].mxu0
  %v1134 = vadd.f32 0.0, %v1133
  %v1135 = vpop.f32.mrb[0].mxu0
  %1136 = vdwg.mxu0
  %v1138 = vrot.slane %v1134, 1
  %v1139 = vrot.slane %v1134, 2
  %v1140 = vrot.slane %v1134, 3
  %v1141 = vrot.slane %v1134, 4
  %v1142 = vrot.slane %v1134, 5
  %v1143 = vrot.slane %v1134, 6
  %v1144 = vrot.slane %v1134, 7
  %v1153 = vadd.f32 %v132, %v1138
  %v1154 = vadd.f32 %v137, %v1139
  %v1155 = vadd.f32 %v142, %v1140
  %v1156 = vadd.f32 %v147, %v1141
  %v1157 = vadd.f32 %v152, %v1142
  %v1158 = vadd.f32 %v157, %v1143
  %v1159 = vadd.f32 %v162, %v1144
  %v1160 = vadd.f32 %v167, %v1134
  %v1161 = vtanh.pop %v1153
  %v1162 = vtanh.pop %v1154
  %v1163 = vtanh.pop %v1155
  %v1164 = vtanh.pop %v1156
  %v1165 = vtanh.pop %v1157
  %v1166 = vtanh.pop %v1158
  %v1167 = vtanh.pop %v1159
  %v1168 = vtanh.pop %v1160
  %vm1169 = vcmask 1040384
  %v1170 = vsel %vm1169, %v272, %v405
  %v1171 = vsel %vm1169, %v273, %v406
  %v1172 = vsel %vm1169, %v274, %v407
  %v1173 = vsel %vm1169, %v275, %v408
  %v1174 = vsel %vm1169, %v276, %v409
  %v1175 = vsel %vm1169, %v277, %v410
  %v1176 = vsel %vm1169, %v278, %v411
  %v1177 = vsel %vm1169, %v279, %v412
  %vm1178 = vcmask 1041408
  %v1179 = vsel %vm1178, %v1170, %v531
  %v1180 = vsel %vm1178, %v1171, %v532
  %v1181 = vsel %vm1178, %v1172, %v533
  %v1182 = vsel %vm1178, %v1173, %v534
  %v1183 = vsel %vm1178, %v1174, %v535
  %v1184 = vsel %vm1178, %v1175, %v536
  %v1185 = vsel %vm1178, %v1176, %v537
  %v1186 = vsel %vm1178, %v1177, %v538
  %vm1187 = vcmask 1042432
  %v1188 = vsel %vm1187, %v1179, %v657
  %v1189 = vsel %vm1187, %v1180, %v658
  %v1190 = vsel %vm1187, %v1181, %v659
  %v1191 = vsel %vm1187, %v1182, %v660
  %v1192 = vsel %vm1187, %v1183, %v661
  %v1193 = vsel %vm1187, %v1184, %v662
  %v1194 = vsel %vm1187, %v1185, %v663
  %v1195 = vsel %vm1187, %v1186, %v664
  %vm1196 = vcmask 1043456
  %v1197 = vsel %vm1196, %v1188, %v783
  %v1198 = vsel %vm1196, %v1189, %v784
  %v1199 = vsel %vm1196, %v1190, %v785
  %v1200 = vsel %vm1196, %v1191, %v786
  %v1201 = vsel %vm1196, %v1192, %v787
  %v1202 = vsel %vm1196, %v1193, %v788
  %v1203 = vsel %vm1196, %v1194, %v789
  %v1204 = vsel %vm1196, %v1195, %v790
  %vm1205 = vcmask 1044480
  %v1206 = vsel %vm1205, %v1197, %v909
  %v1207 = vsel %vm1205, %v1198, %v910
  %v1208 = vsel %vm1205, %v1199, %v911
  %v1209 = vsel %vm1205, %v1200, %v912
  %v1210 = vsel %vm1205, %v1201, %v913
  %v1211 = vsel %vm1205, %v1202, %v914
  %v1212 = vsel %vm1205, %v1203, %v915
  %v1213 = vsel %vm1205, %v1204, %v916
  %vm1214 = vcmask 1045504
  %v1215 = vsel %vm1214, %v1206, %v1035
  %v1216 = vsel %vm1214, %v1207, %v1036
  %v1217 = vsel %vm1214, %v1208, %v1037
  %v1218 = vsel %vm1214, %v1209, %v1038
  %v1219 = vsel %vm1214, %v1210, %v1039
  %v1220 = vsel %vm1214, %v1211, %v1040
  %v1221 = vsel %vm1214, %v1212, %v1041
  %v1222 = vsel %vm1214, %v1213, %v1042
  %vm1223 = vcmask 1046528
  %v1224 = vsel %vm1223, %v1215, %v1161
  %v1225 = vsel %vm1223, %v1216, %v1162
  %v1226 = vsel %vm1223, %v1217, %v1163
  %v1227 = vsel %vm1223, %v1218, %v1164
  %v1228 = vsel %vm1223, %v1219, %v1165
  %v1229 = vsel %vm1223, %v1220, %v1166
  %v1230 = vsel %vm1223, %v1221, %v1167
  %v1231 = vsel %vm1223, %v1222, %v1168
  %v1232 = vld [vmem:[%s4] sm:$0xff]
  %v1233 = vld [vmem:[%s4 + $0x8] sm:$0xff]
  %v1234 = vld [vmem:[%s4 + $0x10] sm:$0xff]
  %v1235 = vld [vmem:[%s4 + $0x18] sm:$0xff]
  %v1236 = vld [vmem:[%s5] sm:$0x1]
  %v1238 = vlaneseq
  %v1239 = vshrl.u32 %v1238, 7
  %v1240 = vsub.s32 0, %v1239
  %v1241 = vrot.slane %v1236, %v1240
  %v1244 = vsel %vm174, %v1224, 0
  %v1247 = vsel %vm174, %v1225, 0
  %v1250 = vsel %vm174, %v1226, 0
  %v1253 = vsel %vm174, %v1227, 0
  %v1256 = vsel %vm174, %v1228, 0
  %v1259 = vsel %vm174, %v1229, 0
  %v1262 = vsel %vm174, %v1230, 0
  %v1265 = vsel %vm174, %v1231, 0
  %1267 = vmatprep.subr.mxu0 0.0
  %1268 = vmatpush1.msra.mxu0 %v1232
  %1269 = vmatprep.subr.mxu0 0.0
  %1270 = vmatpush1.msra.mxu0 %v1233
  %1271 = vmatprep.subr.mxu0 0.0
  %1272 = vmatpush1.msra.mxu0 %v1234
  %1273 = vmatprep.subr.mxu0 0.0
  %1274 = vmatpush1.msra.mxu0 %v1235
  %1275 = vmatprep.subr.mxu0 0.0
  %1276 = vmatpush1.msra.mxu0 0.0
  %1277 = vmatprep.subr.mxu0 0.0
  %1278 = vmatpush1.msra.mxu0 0.0
  %1279 = vmatprep.subr.mxu0 0.0
  %1280 = vmatpush1.msra.mxu0 0.0
  %1281 = vmatprep.subr.mxu0 0.0
  %1282 = vmatpush1.msra.mxu0 0.0
  %1283 = vmatprep.subr.mxu0 0.0
  %1284 = vmatpush1.msra.mxu0 0.0
  %1285 = vmatprep.subr.mxu0 0.0
  %1286 = vmatpush1.msra.mxu0 0.0
  %1287 = vmatprep.subr.mxu0 0.0
  %1288 = vmatpush1.msra.mxu0 0.0
  %1289 = vmatprep.subr.mxu0 0.0
  %1290 = vmatpush1.msra.mxu0 0.0
  %1291 = vmatprep.subr.mxu0 0.0
  %1292 = vmatpush1.msra.mxu0 0.0
  %1293 = vmatprep.subr.mxu0 0.0
  %1294 = vmatpush1.msra.mxu0 0.0
  %1295 = vmatprep.subr.mxu0 0.0
  %1296 = vmatpush1.msra.mxu0 0.0
  %1297 = vmatprep.subr.mxu0 0.0
  %1298 = vmatpush1.msra.mxu0 0.0
  %1299 = vmatprep.subr.mxu0 0.0
  %1300 = vmatpush1.msra.mxu0 0.0
  %1301 = vmatprep.subr.mxu0 0.0
  %1302 = vmatpush1.msra.mxu0 0.0
  %1303 = vmatprep.subr.mxu0 0.0
  %1304 = vmatpush1.msra.mxu0 0.0
  %1305 = vmatprep.subr.mxu0 0.0
  %1306 = vmatpush1.msra.mxu0 0.0
  %1307 = vmatprep.subr.mxu0 0.0
  %1308 = vmatpush1.msra.mxu0 0.0
  %1309 = vmatprep.subr.mxu0 0.0
  %1310 = vmatpush1.msra.mxu0 0.0
  %1311 = vmatprep.subr.mxu0 0.0
  %1312 = vmatpush1.msra.mxu0 0.0
  %1313 = vmatprep.subr.mxu0 0.0
  %1314 = vmatpush1.msra.mxu0 0.0
  %1315 = vmatprep.subr.mxu0 0.0
  %1316 = vmatpush1.msra.mxu0 0.0
  %1317 = vmatprep.subr.mxu0 0.0
  %1318 = vmatpush1.msra.mxu0 0.0
  %1319 = vmatprep.subr.mxu0 0.0
  %1320 = vmatpush1.msra.mxu0 0.0
  %1321 = vmatprep.subr.mxu0 0.0
  %1322 = vmatpush1.msra.mxu0 0.0
  %1323 = vmatprep.subr.mxu0 0.0
  %1324 = vmatpush1.msra.mxu0 0.0
  %1325 = vmatprep.subr.mxu0 0.0
  %1326 = vmatpush1.msra.mxu0 0.0
  %1327 = vmatprep.subr.mxu0 0.0
  %1328 = vmatpush1.msra.mxu0 0.0
  %1329 = vmatprep.subr.mxu0 0.0
  %1330 = vmatpush1.msra.mxu0 0.0
  %1331 = vmatprep.mubr.f32.mxu0 0.0
  %1332 = vmatmul.mubr.f32.gmra.mrb[0].mxu0 %v1244
  %v1333 = vpop.f32.mrb[0].mxu0
  %v1334 = vadd.f32 %v1241, %v1333
  %v1335 = vpop.f32.mrb[0].mxu0
  %1336 = vmatprep.mubr.f32.mxu0 0.0
  %1337 = vmatmul.mubr.f32.gmra.mrb[0].mxu0 %v1247
  %v1338 = vpop.f32.mrb[0].mxu0
  %v1339 = vadd.f32 %v1241, %v1338
  %v1340 = vpop.f32.mrb[0].mxu0
  %1341 = vmatprep.mubr.f32.mxu0 0.0
  %1342 = vmatmul.mubr.f32.gmra.mrb[0].mxu0 %v1250
  %v1343 = vpop.f32.mrb[0].mxu0
  %v1344 = vadd.f32 %v1241, %v1343
  %v1345 = vpop.f32.mrb[0].mxu0
  %1346 = vmatprep.mubr.f32.mxu0 0.0
  %1347 = vmatmul.mubr.f32.gmra.mrb[0].mxu0 %v1253
  %v1348 = vpop.f32.mrb[0].mxu0
  %v1349 = vadd.f32 %v1241, %v1348
  %v1350 = vpop.f32.mrb[0].mxu0
  %1351 = vmatprep.mubr.f32.mxu0 0.0
  %1352 = vmatmul.mubr.f32.gmra.mrb[0].mxu0 %v1256
  %v1353 = vpop.f32.mrb[0].mxu0
  %v1354 = vadd.f32 %v1241, %v1353
  %v1355 = vpop.f32.mrb[0].mxu0
  %1356 = vmatprep.mubr.f32.mxu0 0.0
  %1357 = vmatmul.mubr.f32.gmra.mrb[0].mxu0 %v1259
  %v1358 = vpop.f32.mrb[0].mxu0
  %v1359 = vadd.f32 %v1241, %v1358
  %v1360 = vpop.f32.mrb[0].mxu0
  %1361 = vmatprep.mubr.f32.mxu0 0.0
  %1362 = vmatmul.mubr.f32.gmra.mrb[0].mxu0 %v1262
  %v1363 = vpop.f32.mrb[0].mxu0
  %v1364 = vadd.f32 %v1241, %v1363
  %v1365 = vpop.f32.mrb[0].mxu0
  %1366 = vmatprep.mubr.f32.mxu0 0.0
  %1367 = vmatmul.mubr.f32.gmra.mrb[0].mxu0 %v1265
  %v1368 = vpop.f32.mrb[0].mxu0
  %v1369 = vadd.f32 %v1241, %v1368
  %v1370 = vpop.f32.mrb[0].mxu0
  %1371 = vdwg.mxu0
  %vm1372 = vcmask 31744
  %1373 = vst.msk [vmem:[%s6] sm:$0xff] %vm1372, %v1334
  %1374 = vst.msk [vmem:[%s6 + $0x8] sm:$0xff] %vm1372, %v1339
  %1375 = vst.msk [vmem:[%s6 + $0x10] sm:$0xff] %vm1372, %v1344
  %1376 = vst.msk [vmem:[%s6 + $0x18] sm:$0xff] %vm1372, %v1349
  %1377 = vst.msk [vmem:[%s6 + $0x20] sm:$0xff] %vm1372, %v1354
  %1378 = vst.msk [vmem:[%s6 + $0x28] sm:$0xff] %vm1372, %v1359
  %1379 = vst.msk [vmem:[%s6 + $0x30] sm:$0xff] %vm1372, %v1364
  %1380 = vst.msk [vmem:[%s6 + $0x38] sm:$0xff] %vm1372, %v1369
  // Predicated region
  $region26: #{rnn_forward.1} parent=0 // pred_check
    _
  $region27: #{rnn_forward.1} parent=0 // pred_check_branch
    %1382 = sbr.rel (0) target = $region29
  $region28: #{rnn_forward.1} parent=0 // pred_region
    _
  $region29: #{rnn_forward.1} parent=0 // pred_fallthru
    _
  // Predicated region
  $region30: #{rnn_forward.1} parent=0 // pred_check
    _
  $region31: #{rnn_forward.1} parent=0 // pred_check_branch
    %1384 = sbr.rel (0) target = $region33
  $region32: #{rnn_forward.1} parent=0 // pred_region
    _
  $region33: #{rnn_forward.1} parent=0 // pred_fallthru
    _

</llo_original>
